<compile_context>
chip_gen: v7x
topology: tpu7x:2x2x1
jax: 0.10.0
libtpu: 0.0.40
codegen_flags: <defaults>
</compile_context>

<pallas_src>
import functools

import jax
import jax.numpy as jnp
from jax.experimental import pallas as pl
from jax.experimental.pallas import tpu as pltpu

_LANE = 128


def _round_up(n, m):
    return ((n + m - 1) // m) * m


def _gru_decoder_kernel(
    x_ref,      # (B, H)           step-t GRU input (pre-ReLU), step axis squeezed by BlockSpec
    h0_ref,     # (B, H)           initial hidden state (read only at t == 0)
    w_ref,      # (2H, 4*Hp + Vp)  fused weight slab: [r | z | n_sum | n_hid | out] column blocks
    b_ref,      # (1, 4*Hp + Vp)   fused bias row (b_ih + b_hh folded for r/z/n_sum; b_hn; b_out)
    # outputs
    proj_ref,   # (B, Vp)          per-step projection (lane-dense, zero-padded to Vp)
    out_ref,    # (B, H)           per-step GRU output (== hidden state of this step)
    # scratch
    h_scr,      # (B, H) VMEM      recurrent state carried across grid steps
    *, H, Hp,
):
    t = pl.program_id(0)

    @pl.when(t == 0)
    def _init():
        h_scr[...] = h0_ref[...]

    x = jnp.maximum(x_ref[...], 0.0)                 # ReLU applied to the GRU input (forward())
    h_prev = h_scr[...]                              # (B, H)
    xh = jnp.concatenate([x, h_prev], axis=-1)       # (B, 2H) -> single fused MXU operand
    cdt = w_ref.dtype                                # f32 by default, optionally bf16 weights

    # One MXU push for all gates. Column blocks (each Hp lanes wide, tile-aligned):
    #   [0:Hp)      gi_r + gh_r + b_ir + b_hr
    #   [Hp:2Hp)    gi_z + gh_z + b_iz + b_hz
    #   [2Hp:3Hp)   gi_n + gh_n + b_in + b_hn
    #   [3Hp:4Hp)   gh_n + b_hn
    g = (jnp.dot(xh.astype(cdt), w_ref[:, 0:4 * Hp],
                 preferred_element_type=jnp.float32)
         + b_ref[:, 0:4 * Hp])                       # (B, 4*Hp), f32

    r = jax.nn.sigmoid(g[:, 0:Hp])                   # (B, Hp); only the first H lanes are used
    z = jax.nn.sigmoid(g[:, Hp:Hp + H])              # (B, H)
    # n = tanh(gi_n + b_in + r*(gh_n + b_hn)) == tanh(g_sum_n - (1 - r) * g_hn)
    n_pre = g[:, 2 * Hp:3 * Hp] - (1.0 - r) * g[:, 3 * Hp:4 * Hp]
    n = jnp.tanh(n_pre[:, 0:H])                      # (B, H)

    h_new = (1.0 - z) * n + z * h_prev               # (B, H)
    h_scr[...] = h_new                               # carry to next step
    out_ref[...] = h_new                             # GRU output for this step

    # Output projection for this step: Linear(h_t). W_out^T lives at rows [H:2H) of the slab.
    proj_ref[...] = (jnp.dot(h_new.astype(cdt), w_ref[H:2 * H, 4 * Hp:],
                             preferred_element_type=jnp.float32)
                     + b_ref[:, 4 * Hp:])


def prepare_params(params, *, param_dtype=jnp.float32):
    """One-time prep: build the fused (2H, 4*Hp+Vp) weight slab and (1, 4*Hp+Vp) bias row.

    Gate column order is r | z | n_sum | n_hid | out, each gate block zero-padded to Hp=round_up(H,128)
    lanes and the projection block to Vp=round_up(V,128) lanes, so every in-kernel slice is tile-aligned.
    """
    w_ih = jnp.asarray(params["w_ih"], jnp.float32)   # (3H, H), gate rows [r|z|n]
    w_hh = jnp.asarray(params["w_hh"], jnp.float32)   # (3H, H)
    b_ih = jnp.asarray(params["b_ih"], jnp.float32)   # (3H,)
    b_hh = jnp.asarray(params["b_hh"], jnp.float32)   # (3H,)
    w_out = jnp.asarray(params["w_out"], jnp.float32)  # (V, H)
    b_out = jnp.asarray(params["b_out"], jnp.float32)  # (V,)

    H = w_hh.shape[1]
    V = w_out.shape[0]
    Hp = _round_up(H, _LANE)
    Vp = _round_up(V, _LANE)

    wir, wiz, win = (w_ih[i * H:(i + 1) * H, :].T for i in range(3))   # each (H, H)
    whr, whz, whn = (w_hh[i * H:(i + 1) * H, :].T for i in range(3))
    bir, biz, bin_ = (b_ih[i * H:(i + 1) * H] for i in range(3))
    bhr, bhz, bhn = (b_hh[i * H:(i + 1) * H] for i in range(3))

    W = jnp.zeros((2 * H, 4 * Hp + Vp), jnp.float32)
    W = W.at[0:H, 0 * Hp:0 * Hp + H].set(wir)
    W = W.at[H:2 * H, 0 * Hp:0 * Hp + H].set(whr)
    W = W.at[0:H, 1 * Hp:1 * Hp + H].set(wiz)
    W = W.at[H:2 * H, 1 * Hp:1 * Hp + H].set(whz)
    W = W.at[0:H, 2 * Hp:2 * Hp + H].set(win)
    W = W.at[H:2 * H, 2 * Hp:2 * Hp + H].set(whn)
    W = W.at[H:2 * H, 3 * Hp:3 * Hp + H].set(whn)          # gh_n alone (for the r-gated n term)
    W = W.at[H:2 * H, 4 * Hp:4 * Hp + V].set(w_out.T)      # projection

    b = jnp.zeros((1, 4 * Hp + Vp), jnp.float32)
    b = b.at[0, 0 * Hp:0 * Hp + H].set(bir + bhr)
    b = b.at[0, 1 * Hp:1 * Hp + H].set(biz + bhz)
    b = b.at[0, 2 * Hp:2 * Hp + H].set(bin_ + bhn)
    b = b.at[0, 3 * Hp:3 * Hp + H].set(bhn)
    b = b.at[0, 4 * Hp:4 * Hp + V].set(b_out)

    return {"w": W.astype(param_dtype), "b": b}            # bias stays f32 (gate math is f32)


@functools.partial(jax.jit, static_argnames=("vocab_size",))
def gru_decoder_forward(inp, hidden, prepped, *, vocab_size):
    """inp: (B, S, H) f32, hidden: (1, B, H) f32. Returns (projection, output, hidden)."""
    B, S, H = inp.shape
    w, b = prepped["w"], prepped["b"]
    Vp = _round_up(vocab_size, _LANE)
    Hp = (w.shape[1] - Vp) // 4
    assert w.shape[0] == 2 * H and Hp == _round_up(H, _LANE)

    x_steps = jnp.transpose(inp, (1, 0, 2))     # (S, B, H); free reshape when S == 1
    h0 = hidden[0]                              # (B, H)

    kernel = functools.partial(_gru_decoder_kernel, H=H, Hp=Hp)

    proj_seq, out_seq = pl.pallas_call(
        kernel,
        out_shape=(
            jax.ShapeDtypeStruct((S, B, Vp), jnp.float32),
            jax.ShapeDtypeStruct((S, B, H), jnp.float32),
        ),
        grid_spec=pltpu.PrefetchScalarGridSpec(
            num_scalar_prefetch=0,
            grid=(S,),
            in_specs=[
                pl.BlockSpec((None, B, H), lambda t: (t, 0, 0)),   # x_t, streamed per step
                pl.BlockSpec((B, H), lambda t: (0, 0)),            # h0, fetched once
                pl.BlockSpec(w.shape, lambda t: (0, 0)),           # weight slab, VMEM-resident
                pl.BlockSpec(b.shape, lambda t: (0, 0)),           # bias slab, VMEM-resident
            ],
            out_specs=[
                pl.BlockSpec((None, B, Vp), lambda t: (t, 0, 0)),  # per-step logits (padded)
                pl.BlockSpec((None, B, H), lambda t: (t, 0, 0)),   # per-step hidden
            ],
            scratch_shapes=[pltpu.VMEM((B, H), jnp.float32)],      # recurrent state carry
        ),
        compiler_params=pltpu.CompilerParams(
            dimension_semantics=("arbitrary",)),                   # sequential: h carried in scratch
    )(x_steps, h0, w, b)

    output = jnp.transpose(out_seq, (1, 0, 2))  # (B, S, H)
    hidden_out = out_seq[S - 1:S]               # (1, B, H) final hidden state
    # torch's output.squeeze(1): squeezes only when S == 1; Linear then gives (B, V) vs (B, S, V).
    if S == 1:
        projection = proj_seq[0, :, :vocab_size]
    else:
        projection = jnp.transpose(proj_seq, (1, 0, 2))[:, :, :vocab_size]
    return projection, output, hidden_out


def _ref_forward(inp, hidden, params):
    """Pure-JAX reference mirroring torch.nn.GRU + Linear semantics for validation."""
    B, S, H = inp.shape
    h = hidden[0]
    w_ih, w_hh, b_ih, b_hh = params["w_ih"], params["w_hh"], params["b_ih"], params["b_hh"]
    outs = []
    for t in range(S):
        x = jnp.maximum(inp[:, t, :], 0.0)
        gi = x @ w_ih.T + b_ih
        gh = h @ w_hh.T + b_hh
        r = jax.nn.sigmoid(gi[:, 0:H] + gh[:, 0:H])
        z = jax.nn.sigmoid(gi[:, H:2 * H] + gh[:, H:2 * H])
        n = jnp.tanh(gi[:, 2 * H:3 * H] + r * gh[:, 2 * H:3 * H])
        h = (1.0 - z) * n + z * h
        outs.append(h)
    out = jnp.stack(outs, axis=1)                        # (B, S, H)
    sq = out[:, 0, :] if S == 1 else out                 # torch squeeze(1) semantics
    proj = sq @ params["w_out"].T + params["b_out"]
    return proj, out, h[None]


def init_params(key, hidden_size, vocab_size):
    """Deterministic parameter init (uniform +-1/sqrt(hidden), mimicking PyTorch defaults)."""
    ks = jax.random.split(key, 6)
    bound = 1.0 / jnp.sqrt(hidden_size)
    u = lambda k, shape: jax.random.uniform(k, shape, jnp.float32, -bound, bound)
    return {
        "w_ih": u(ks[0], (3 * hidden_size, hidden_size)),
        "w_hh": u(ks[1], (3 * hidden_size, hidden_size)),
        "b_ih": u(ks[2], (3 * hidden_size,)),
        "b_hh": u(ks[3], (3 * hidden_size,)),
        "w_out": u(ks[4], (vocab_size, hidden_size)),
        "b_out": u(ks[5], (vocab_size,)),
    }


if __name__ == "__main__":
    B, S, H, V = 2, 1, 32, 64   # single decoder step, as implied by output.squeeze(1)

    key = jax.random.PRNGKey(0)
    k_inp, k_h, k_p, k_inp2 = jax.random.split(key, 4)

    inp = jax.random.normal(k_inp, (B, S, H), jnp.float32)
    hidden = jax.random.normal(k_h, (1, B, H), jnp.float32)
    params = init_params(k_p, H, V)

    prepped = prepare_params(params)   # one-time weight/bias slab construction (hoisted)

    # Single-step forward (matches the module's forward exactly).
    proj, out, hT = gru_decoder_forward(inp, hidden, prepped, vocab_size=V)
    jax.block_until_ready((proj, out, hT))
    proj_r, out_r, hT_r = _ref_forward(inp, hidden, params)
    assert proj.shape == proj_r.shape and out.shape == out_r.shape and hT.shape == hT_r.shape
    assert jnp.allclose(proj, proj_r, atol=1e-5, rtol=1e-5)
    assert jnp.allclose(out, out_r, atol=1e-5, rtol=1e-5)
    assert jnp.allclose(hT, hT_r, atol=1e-5, rtol=1e-5)

    # Multi-step check exercising the in-kernel decode loop (grid over steps, h carried in VMEM).
    S2 = 4
    inp2 = jax.random.normal(k_inp2, (B, S2, H), jnp.float32)
    proj2, out2, hT2 = gru_decoder_forward(inp2, hidden, prepped, vocab_size=V)
    jax.block_until_ready((proj2, out2, hT2))
    proj2_r, out2_r, hT2_r = _ref_forward(inp2, hidden, params)
    assert proj2.shape == proj2_r.shape and out2.shape == out2_r.shape and hT2.shape == hT2_r.shape
    assert jnp.allclose(proj2, proj2_r, atol=1e-5, rtol=1e-5)
    assert jnp.allclose(out2, out2_r, atol=1e-5, rtol=1e-5)
    assert jnp.allclose(hT2, hT2_r, atol=1e-5, rtol=1e-5)

    print("KERNEL_OK")
</pallas_src>

<mosaic_0001>
module attributes {stable_mosaic.version = 11 : i64} {
  func.func @_gru_decoder_kernel(%arg0: i32, %arg1: memref<1x2x32xf32, #tpu.memory_space<vmem>>, %arg2: memref<2x32xf32, #tpu.memory_space<vmem>>, %arg3: memref<64x640xf32, #tpu.memory_space<vmem>>, %arg4: memref<1x640xf32, #tpu.memory_space<vmem>>, %arg5: memref<1x2x128xf32, #tpu.memory_space<vmem>>, %arg6: memref<1x2x32xf32, #tpu.memory_space<vmem>>, %arg7: memref<2x32xf32, #tpu.memory_space<vmem>>) attributes {dimension_semantics = [#tpu.dimension_semantics<arbitrary>], iteration_bounds = array<i64: 1>, scalar_prefetch = 0 : i64, scratch_operands = 1 : i64, tpu.core_type = #tpu.core_type<tc>, window_params = [{transform_indices = @transform_0, window_bounds = array<i64: 1, 2, 32>}, {pipeline_mode = #tpu.pipeline_mode<synchronous>, transform_indices = @transform_1, window_bounds = array<i64: 2, 32>}, {pipeline_mode = #tpu.pipeline_mode<synchronous>, transform_indices = @transform_2, window_bounds = array<i64: 64, 640>}, {pipeline_mode = #tpu.pipeline_mode<synchronous>, transform_indices = @transform_3, window_bounds = array<i64: 1, 640>}, {transform_indices = @transform_4, window_bounds = array<i64: 1, 2, 128>}, {transform_indices = @transform_5, window_bounds = array<i64: 1, 2, 32>}]} {
    %c0_i32 = arith.constant 0 : i32
    %0 = arith.cmpi eq, %arg0, %c0_i32 : i32
    %1 = arith.extui %0 : i1 to i32
    %c0_i32_0 = arith.constant 0 : i32
    %2 = arith.cmpi ne, %1, %c0_i32_0 : i32
    scf.if %2 {
      %c0_25 = arith.constant 0 : index
      %c0_26 = arith.constant 0 : index
      %51 = vector.load %arg2[%c0_25, %c0_26] : memref<2x32xf32, #tpu.memory_space<vmem>>, vector<2x32xf32>
      %c0_27 = arith.constant 0 : index
      %c0_28 = arith.constant 0 : index
      %52 = vector.load %arg7[%c0_27, %c0_28] : memref<2x32xf32, #tpu.memory_space<vmem>>, vector<2x32xf32>
      tpu.vector_store %arg7[%c0_27, %c0_28], %51 {strides = array<i32>} : memref<2x32xf32, #tpu.memory_space<vmem>>, vector<2x32xf32>,
    } else {
    }
    %c0 = arith.constant 0 : index
    %c0_1 = arith.constant 0 : index
    %c0_2 = arith.constant 0 : index
    %3 = vector.load %arg1[%c0, %c0_1, %c0_2] : memref<1x2x32xf32, #tpu.memory_space<vmem>>, vector<1x2x32xf32>
    %4 = vector.shape_cast %3 : vector<1x2x32xf32> to vector<2x32xf32>
    %cst = arith.constant 0.000000e+00 : f32
    %5 = vector.broadcast %cst : f32 to vector<2x32xf32>
    %6 = arith.maximumf %4, %5 : vector<2x32xf32>
    %c0_3 = arith.constant 0 : index
    %c0_4 = arith.constant 0 : index
    %7 = vector.load %arg7[%c0_3, %c0_4] : memref<2x32xf32, #tpu.memory_space<vmem>>, vector<2x32xf32>
    %8 = tpu.concatenate %6, %7 in 1 : vector<2x32xf32>, vector<2x32xf32> -> vector<2x64xf32>
    %c0_5 = arith.constant 0 : index
    %c0_6 = arith.constant 0 : index
    %9 = vector.load %arg3[%c0_5, %c0_6] : memref<64x640xf32, #tpu.memory_space<vmem>>, vector<64x512xf32>
    %cst_7 = arith.constant dense<0.000000e+00> : vector<2x512xf32>
    %10 = tpu.matmul %8, %9, %cst_7 {dimension_numbers = #tpu.dot_dimension_numbers<[1], [0], [0], [1], [0, 0, 1, 1], [], []>} : vector<2x64xf32>, vector<64x512xf32>, vector<2x512xf32> -> vector<2x512xf32>
    %c0_8 = arith.constant 0 : index
    %c0_9 = arith.constant 0 : index
    %11 = vector.load %arg4[%c0_8, %c0_9] : memref<1x640xf32, #tpu.memory_space<vmem>>, vector<1x512xf32>
    %12 = vector.broadcast %11 : vector<1x512xf32> to vector<2x512xf32>
    %13 = arith.addf %10, %12 : vector<2x512xf32>
    %14 = vector.extract_strided_slice %13 {offsets = [0, 0], sizes = [2, 128], strides = [1, 1]} : vector<2x512xf32> to vector<2x128xf32>
    %15 = arith.negf %14 : vector<2x128xf32>
    %16 = math.exp %15 : vector<2x128xf32>
    %cst_10 = arith.constant 1.000000e+00 : f32
    %17 = vector.broadcast %cst_10 : f32 to vector<2x128xf32>
    %18 = arith.addf %17, %16 : vector<2x128xf32>
    %19 = arith.divf %17, %18 : vector<2x128xf32>
    %20 = vector.extract_strided_slice %13 {offsets = [0, 128], sizes = [2, 32], strides = [1, 1]} : vector<2x512xf32> to vector<2x32xf32>
    %21 = arith.negf %20 : vector<2x32xf32>
    %22 = math.exp %21 : vector<2x32xf32>
    %cst_11 = arith.constant 1.000000e+00 : f32
    %23 = vector.broadcast %cst_11 : f32 to vector<2x32xf32>
    %24 = arith.addf %23, %22 : vector<2x32xf32>
    %25 = arith.divf %23, %24 : vector<2x32xf32>
    %26 = vector.extract_strided_slice %13 {offsets = [0, 256], sizes = [2, 128], strides = [1, 1]} : vector<2x512xf32> to vector<2x128xf32>
    %cst_12 = arith.constant 1.000000e+00 : f32
    %27 = vector.broadcast %cst_12 : f32 to vector<2x128xf32>
    %28 = arith.subf %27, %19 : vector<2x128xf32>
    %29 = vector.extract_strided_slice %13 {offsets = [0, 384], sizes = [2, 128], strides = [1, 1]} : vector<2x512xf32> to vector<2x128xf32>
    %30 = arith.mulf %28, %29 : vector<2x128xf32>
    %31 = arith.subf %26, %30 : vector<2x128xf32>
    %32 = vector.extract_strided_slice %31 {offsets = [0, 0], sizes = [2, 32], strides = [1, 1]} : vector<2x128xf32> to vector<2x32xf32>
    %33 = math.tanh %32 : vector<2x32xf32>
    %cst_13 = arith.constant 1.000000e+00 : f32
    %34 = vector.broadcast %cst_13 : f32 to vector<2x32xf32>
    %35 = arith.subf %34, %25 : vector<2x32xf32>
    %36 = arith.mulf %35, %33 : vector<2x32xf32>
    %37 = arith.mulf %25, %7 : vector<2x32xf32>
    %38 = arith.addf %36, %37 : vector<2x32xf32>
    %c0_14 = arith.constant 0 : index
    %c0_15 = arith.constant 0 : index
    %39 = vector.load %arg7[%c0_14, %c0_15] : memref<2x32xf32, #tpu.memory_space<vmem>>, vector<2x32xf32>
    tpu.vector_store %arg7[%c0_14, %c0_15], %38 {strides = array<i32>} : memref<2x32xf32, #tpu.memory_space<vmem>>, vector<2x32xf32>,
    %c0_16 = arith.constant 0 : index
    %c0_17 = arith.constant 0 : index
    %c0_18 = arith.constant 0 : index
    %40 = vector.load %arg6[%c0_16, %c0_17, %c0_18] : memref<1x2x32xf32, #tpu.memory_space<vmem>>, vector<1x2x32xf32>
    %41 = vector.shape_cast %40 : vector<1x2x32xf32> to vector<2x32xf32>
    %42 = vector.shape_cast %38 : vector<2x32xf32> to vector<1x2x32xf32>
    tpu.vector_store %arg6[%c0_16, %c0_17, %c0_18], %42 {strides = array<i32>} : memref<1x2x32xf32, #tpu.memory_space<vmem>>, vector<1x2x32xf32>,
    %c32 = arith.constant 32 : index
    %c512 = arith.constant 512 : index
    %43 = vector.load %arg3[%c32, %c512] : memref<64x640xf32, #tpu.memory_space<vmem>>, vector<32x128xf32>
    %cst_19 = arith.constant dense<0.000000e+00> : vector<2x128xf32>
    %44 = tpu.matmul %38, %43, %cst_19 {dimension_numbers = #tpu.dot_dimension_numbers<[1], [0], [0], [1], [0, 0, 1, 1], [], []>} : vector<2x32xf32>, vector<32x128xf32>, vector<2x128xf32> -> vector<2x128xf32>
    %c0_20 = arith.constant 0 : index
    %c512_21 = arith.constant 512 : index
    %45 = vector.load %arg4[%c0_20, %c512_21] : memref<1x640xf32, #tpu.memory_space<vmem>>, vector<1x128xf32>
    %46 = vector.broadcast %45 : vector<1x128xf32> to vector<2x128xf32>
    %47 = arith.addf %44, %46 : vector<2x128xf32>
    %c0_22 = arith.constant 0 : index
    %c0_23 = arith.constant 0 : index
    %c0_24 = arith.constant 0 : index
    %48 = vector.load %arg5[%c0_22, %c0_23, %c0_24] : memref<1x2x128xf32, #tpu.memory_space<vmem>>, vector<1x2x128xf32>
    %49 = vector.shape_cast %48 : vector<1x2x128xf32> to vector<2x128xf32>
    %50 = vector.shape_cast %47 : vector<2x128xf32> to vector<1x2x128xf32>
    tpu.vector_store %arg5[%c0_22, %c0_23, %c0_24], %50 {strides = array<i32>} : memref<1x2x128xf32, #tpu.memory_space<vmem>>, vector<1x2x128xf32>,
    return
  }
  func.func @transform_0(%arg0: i32) -> (i32, i32, i32) {
    %c0_i32 = arith.constant 0 : i32
    %c0_i32_0 = arith.constant 0 : i32
    %c0_i32_1 = arith.constant 0 : i32
    return %arg0, %c0_i32, %c0_i32_0 : i32, i32, i32
  }
  func.func @transform_1(%arg0: i32) -> (i32, i32) {
    %c0_i32 = arith.constant 0 : i32
    %c0_i32_0 = arith.constant 0 : i32
    %c0_i32_1 = arith.constant 0 : i32
    return %c0_i32, %c0_i32_0 : i32, i32
  }
  func.func @transform_2(%arg0: i32) -> (i32, i32) {
    %c0_i32 = arith.constant 0 : i32
    %c0_i32_0 = arith.constant 0 : i32
    %c0_i32_1 = arith.constant 0 : i32
    return %c0_i32, %c0_i32_0 : i32, i32
  }
  func.func @transform_3(%arg0: i32) -> (i32, i32) {
    %c0_i32 = arith.constant 0 : i32
    %c0_i32_0 = arith.constant 0 : i32
    %c0_i32_1 = arith.constant 0 : i32
    return %c0_i32, %c0_i32_0 : i32, i32
  }
  func.func @transform_4(%arg0: i32) -> (i32, i32, i32) {
    %c0_i32 = arith.constant 0 : i32
    %c0_i32_0 = arith.constant 0 : i32
    %c0_i32_1 = arith.constant 0 : i32
    return %arg0, %c0_i32, %c0_i32_0 : i32, i32, i32
  }
  func.func @transform_5(%arg0: i32) -> (i32, i32, i32) {
    %c0_i32 = arith.constant 0 : i32
    %c0_i32_0 = arith.constant 0 : i32
    %c0_i32_1 = arith.constant 0 : i32
    return %arg0, %c0_i32, %c0_i32_0 : i32, i32, i32
  }
}

</mosaic_0001>

<llo_original>
// kernel: gru_decoder_forward.1
$region0: #{gru_decoder_forward.1}
  #allocation0 [shape = 'u32[]', space=smem, size = 0x4, offset = 0x4, fixed_abs, tag = 'smem constant byte address 0x4 - core index']
  #allocation1 [shape = 'u32[144,128]{1,0:T(1,128)}', space=vmem, size = 0x12000, scoped, tag = 'internal scratch']
  #allocation2 [shape = 'f32[2,32]{1,0:T(2,128)}', space=vmem, size = 0x400, scoped, tag = 'scratch operand']
  %s0 = inlined_call_operand.vmem [shape: f32[1,2,32], index: 0, kind: input, shape index: {}]
  %s1 = inlined_call_operand.vmem [shape: f32[2,32], index: 1, kind: input, shape index: {}]
  %s2 = inlined_call_operand.hbm [shape: f32[64,640], index: 2, kind: input, shape index: {}]
  %s3 = inlined_call_operand.vmem [shape: f32[1,640], index: 3, kind: input, shape index: {}]
  %s4 = inlined_call_operand.vmem [shape: f32[1,2,128], index: 4, kind: output, shape index: {0}]
  %s5 = inlined_call_operand.vmem [shape: f32[1,2,32], index: 5, kind: output, shape index: {1}]
  %6 = xla_tuple %s4, %s5
  %s7 = sld [smem:[#allocation0]]
  $region42: #{gru_decoder_forward.1} parent=0
    _
  %s9 = ssub.s32 1, %s7
  %s10 = scalar_select 0, %s9, %s7
  $region1: #{gru_decoder_forward.1} parent=0
    #allocation3 [shape = 'u8[163840]{0}', space=vmem, size = 0x28000, scoped, tag = 'input window, operand 2, single buffered']
    #allocation4 [shape = 's32[1]{0}', space=sflag, size = 0x4, scoped, tag = 'scoped memory for gru_decoder_forward.1']
    %11 = vsyncpa [#allocation4], 0
    // Predicated region
    $region2: #{gru_decoder_forward.1} parent=1 // pred_check
      _
    $region3: #{gru_decoder_forward.1} parent=1 // pred_check_branch
      %13 = sbr.rel (0) target = $region5
    $region4: #{gru_decoder_forward.1} parent=1 // pred_region
      _
    $region5: #{gru_decoder_forward.1} parent=1 // pred_fallthru
      _
    // Predicated region
    $region6: #{gru_decoder_forward.1} parent=1 // pred_check
      _
    $region7: #{gru_decoder_forward.1} parent=1 // pred_check_branch
      %15 = sbr.rel (0) target = $region9
    $region8: #{gru_decoder_forward.1} parent=1 // pred_region
      _
    $region9: #{gru_decoder_forward.1} parent=1 // pred_fallthru
      _
    // Predicated region
    $region10: #{gru_decoder_forward.1} parent=1 // pred_check
      _
    $region11: #{gru_decoder_forward.1} parent=1 // pred_check_branch
      %17 = sbr.rel (0) target = $region13
    $region12: #{gru_decoder_forward.1} parent=1 // pred_region
      %s19 = ssub.s32 5120, 5120
      %20 = vsyncadd [#allocation4], %s19
      %s21 = sshll.u32 [#allocation3], 4
      %s22 = int_to_ptr.vmem [resolvable:$true] %s21
      %27 = dma.hbm_to_vmem [thread:$0]  %s2, 5120, %s22, [#allocation4], 640, 640, 40
    $region13: #{gru_decoder_forward.1} parent=1 // pred_fallthru
      _
    // Predicated region
    $region14: #{gru_decoder_forward.1} parent=1 // pred_check
      _
    $region15: #{gru_decoder_forward.1} parent=1 // pred_check_branch
      %29 = sbr.rel (0) target = $region17
    $region16: #{gru_decoder_forward.1} parent=1 // pred_region
      _
    $region17: #{gru_decoder_forward.1} parent=1 // pred_fallthru
      _
    // Predicated region
    $region18: #{gru_decoder_forward.1} parent=1 // pred_check
      _
    $region19: #{gru_decoder_forward.1} parent=1 // pred_check_branch
      %31 = sbr.rel (0) target = $region21
    $region20: #{gru_decoder_forward.1} parent=1 // pred_region
      %32 = dma.done [#allocation4], 5120
    $region21: #{gru_decoder_forward.1} parent=1 // pred_fallthru
      _
    %p33 = scmp.eq.s32.totalorder 0, 0
    // Predicated region
    $region22: #{gru_decoder_forward.1} parent=1 // pred_check
      %p34 = pneg %p33
    $region23: #{gru_decoder_forward.1} parent=1 // pred_check_branch
      %36 = sbr.rel (%p34) target = $region25
    $region24: #{gru_decoder_forward.1} parent=1 // pred_region
      %v37 = vld [vmem:[%s1] sm:$0x3]
      %vm38 = vcmask 254976
      %39 = vst.msk [vmem:[#allocation2] sm:$0x3] %vm38, %v37
    $region25: #{gru_decoder_forward.1} parent=1 // pred_fallthru
      _
    %v40 = vld [vmem:[%s0] sm:$0x3]
    %v41 = vmax.f32 %v40, 0.0
    %v42 = vld [vmem:[#allocation2] sm:$0x3]
    %44 = vrot.lane.b32.xlu0 %v42, 32
    %v45 = vpop.permute.xlu0 %44
    %vm47 = vcmask 261120
    %v48 = vsel %vm47, %v41, %v45
    %v49 = vld [vmem:[#allocation3] sm:$0xff]
    %v50 = vld [vmem:[#allocation3 + $0x8] sm:$0xff]
    %v51 = vld [vmem:[#allocation3 + $0x10] sm:$0xff]
    %v52 = vld [vmem:[#allocation3 + $0x18] sm:$0xff]
    %v53 = vld [vmem:[#allocation3 + $0x28] sm:$0xff]
    %v54 = vld [vmem:[#allocation3 + $0x30] sm:$0xff]
    %v55 = vld [vmem:[#allocation3 + $0x38] sm:$0xff]
    %v56 = vld [vmem:[#allocation3 + $0x40] sm:$0xff]
    %v57 = vld [vmem:[#allocation3 + $0x50] sm:$0xff]
    %v58 = vld [vmem:[#allocation3 + $0x58] sm:$0xff]
    %v59 = vld [vmem:[#allocation3 + $0x60] sm:$0xff]
    %v60 = vld [vmem:[#allocation3 + $0x68] sm:$0xff]
    %v61 = vld [vmem:[#allocation3 + $0x78] sm:$0xff]
    %v62 = vld [vmem:[#allocation3 + $0x80] sm:$0xff]
    %v63 = vld [vmem:[#allocation3 + $0x88] sm:$0xff]
    %v64 = vld [vmem:[#allocation3 + $0x90] sm:$0xff]
    %v65 = vld [vmem:[#allocation3 + $0xa0] sm:$0xff]
    %v66 = vld [vmem:[#allocation3 + $0xa8] sm:$0xff]
    %v67 = vld [vmem:[#allocation3 + $0xb0] sm:$0xff]
    %v68 = vld [vmem:[#allocation3 + $0xb8] sm:$0xff]
    %v69 = vld [vmem:[#allocation3 + $0xc8] sm:$0xff]
    %v70 = vld [vmem:[#allocation3 + $0xd0] sm:$0xff]
    %v71 = vld [vmem:[#allocation3 + $0xd8] sm:$0xff]
    %v72 = vld [vmem:[#allocation3 + $0xe0] sm:$0xff]
    %v73 = vld [vmem:[#allocation3 + $0xf0] sm:$0xff]
    %v74 = vld [vmem:[#allocation3 + $0xf8] sm:$0xff]
    %v75 = vld [vmem:[#allocation3 + $0x100] sm:$0xff]
    %v76 = vld [vmem:[#allocation3 + $0x108] sm:$0xff]
    %v77 = vld [vmem:[#allocation3 + $0x118] sm:$0xff]
    %v78 = vld [vmem:[#allocation3 + $0x120] sm:$0xff]
    %v79 = vld [vmem:[#allocation3 + $0x128] sm:$0xff]
    %v80 = vld [vmem:[#allocation3 + $0x130] sm:$0xff]
    %v81 = vld [vmem:[%s3] sm:$0xf]
    %v83 = vlaneseq
    %v84 = vshrl.u32 %v83, 7
    %v85 = vsub.s32 0, %v84
    %v86 = vrot.slane %v81, %v85
    %v87 = vlaneseq
    %v88 = vshrl.u32 %v87, 7
    %v89 = vsub.s32 1, %v88
    %v90 = vrot.slane %v81, %v89
    %v91 = vlaneseq
    %v92 = vshrl.u32 %v91, 7
    %v93 = vsub.s32 2, %v92
    %v94 = vrot.slane %v81, %v93
    %v95 = vlaneseq
    %v96 = vshrl.u32 %v95, 7
    %v97 = vsub.s32 3, %v96
    %v98 = vrot.slane %v81, %v97
    %vm103 = vcmask 523264
    %v105 = vsel %vm103, %v48, 0
    %107 = vmatprep.subr.mxu0 %v50
    %108 = vmatpush1.msra.mxu0 %v49
    %109 = vmatprep.subr.mxu0 %v54
    %110 = vmatpush1.msra.mxu0 %v53
    %111 = vmatprep.subr.mxu0 %v58
    %112 = vmatpush1.msra.mxu0 %v57
    %113 = vmatprep.subr.mxu0 %v62
    %114 = vmatpush1.msra.mxu0 %v61
    %115 = vmatprep.subr.mxu0 %v66
    %116 = vmatpush1.msra.mxu0 %v65
    %117 = vmatprep.subr.mxu0 %v70
    %118 = vmatpush1.msra.mxu0 %v69
    %119 = vmatprep.subr.mxu0 %v74
    %120 = vmatpush1.msra.mxu0 %v73
    %121 = vmatprep.subr.mxu0 %v78
    %122 = vmatpush1.msra.mxu0 %v77
    %123 = vmatprep.subr.mxu0 0.0
    %124 = vmatpush1.msra.mxu0 0.0
    %125 = vmatprep.subr.mxu0 0.0
    %126 = vmatpush1.msra.mxu0 0.0
    %127 = vmatprep.subr.mxu0 0.0
    %128 = vmatpush1.msra.mxu0 0.0
    %129 = vmatprep.subr.mxu0 0.0
    %130 = vmatpush1.msra.mxu0 0.0
    %131 = vmatprep.subr.mxu0 0.0
    %132 = vmatpush1.msra.mxu0 0.0
    %133 = vmatprep.subr.mxu0 0.0
    %134 = vmatpush1.msra.mxu0 0.0
    %135 = vmatprep.subr.mxu0 0.0
    %136 = vmatpush1.msra.mxu0 0.0
    %137 = vmatprep.subr.mxu0 0.0
    %138 = vmatpush1.msra.mxu0 0.0
    %139 = vmatprep.subr.mxu0 0.0
    %140 = vmatpush1.msra.mxu0 0.0
    %141 = vmatprep.subr.mxu0 0.0
    %142 = vmatpush1.msra.mxu0 0.0
    %143 = vmatprep.subr.mxu0 0.0
    %144 = vmatpush1.msra.mxu0 0.0
    %145 = vmatprep.subr.mxu0 0.0
    %146 = vmatpush1.msra.mxu0 0.0
    %147 = vmatprep.subr.mxu0 0.0
    %148 = vmatpush1.msra.mxu0 0.0
    %149 = vmatprep.subr.mxu0 0.0
    %150 = vmatpush1.msra.mxu0 0.0
    %151 = vmatprep.subr.mxu0 0.0
    %152 = vmatpush1.msra.mxu0 0.0
    %153 = vmatprep.subr.mxu0 0.0
    %154 = vmatpush1.msra.mxu0 0.0
    %155 = vmatprep.subr.mxu0 0.0
    %156 = vmatpush1.msra.mxu0 0.0
    %157 = vmatprep.subr.mxu0 0.0
    %158 = vmatpush1.msra.mxu0 0.0
    %159 = vmatprep.subr.mxu0 0.0
    %160 = vmatpush1.msra.mxu0 0.0
    %161 = vmatprep.subr.mxu0 0.0
    %162 = vmatpush1.msra.mxu0 0.0
    %163 = vmatprep.subr.mxu0 0.0
    %164 = vmatpush1.msra.mxu0 0.0
    %165 = vmatprep.subr.mxu0 0.0
    %166 = vmatpush1.msra.mxu0 0.0
    %167 = vmatprep.subr.mxu0 0.0
    %168 = vmatpush1.msra.mxu0 0.0
    %169 = vmatprep.subr.mxu0 0.0
    %170 = vmatpush1.msra.mxu0 0.0
    %171 = vmatprep.mubr.f32.mxu0 0.0
    %172 = vmatmul.mubr.f32.gmra.mrb[0].mxu0 %v105
    %v173 = vpop.f32.mrb[0].mxu0
    %v174 = vadd.f32 %v86, %v173
    %v175 = vpop.f32.mrb[0].mxu0
    %v176 = vadd.f32 %v90, %v175
    %177 = vdwg.mxu0
    %178 = vmatprep.subr.mxu0 %v52
    %179 = vmatpush1.msra.mxu0 %v51
    %180 = vmatprep.subr.mxu0 %v56
    %181 = vmatpush1.msra.mxu0 %v55
    %182 = vmatprep.subr.mxu0 %v60
    %183 = vmatpush1.msra.mxu0 %v59
    %184 = vmatprep.subr.mxu0 %v64
    %185 = vmatpush1.msra.mxu0 %v63
    %186 = vmatprep.subr.mxu0 %v68
    %187 = vmatpush1.msra.mxu0 %v67
    %188 = vmatprep.subr.mxu0 %v72
    %189 = vmatpush1.msra.mxu0 %v71
    %190 = vmatprep.subr.mxu0 %v76
    %191 = vmatpush1.msra.mxu0 %v75
    %192 = vmatprep.subr.mxu0 %v80
    %193 = vmatpush1.msra.mxu0 %v79
    %194 = vmatprep.subr.mxu0 0.0
    %195 = vmatpush1.msra.mxu0 0.0
    %196 = vmatprep.subr.mxu0 0.0
    %197 = vmatpush1.msra.mxu0 0.0
    %198 = vmatprep.subr.mxu0 0.0
    %199 = vmatpush1.msra.mxu0 0.0
    %200 = vmatprep.subr.mxu0 0.0
    %201 = vmatpush1.msra.mxu0 0.0
    %202 = vmatprep.subr.mxu0 0.0
    %203 = vmatpush1.msra.mxu0 0.0
    %204 = vmatprep.subr.mxu0 0.0
    %205 = vmatpush1.msra.mxu0 0.0
    %206 = vmatprep.subr.mxu0 0.0
    %207 = vmatpush1.msra.mxu0 0.0
    %208 = vmatprep.subr.mxu0 0.0
    %209 = vmatpush1.msra.mxu0 0.0
    %210 = vmatprep.subr.mxu0 0.0
    %211 = vmatpush1.msra.mxu0 0.0
    %212 = vmatprep.subr.mxu0 0.0
    %213 = vmatpush1.msra.mxu0 0.0
    %214 = vmatprep.subr.mxu0 0.0
    %215 = vmatpush1.msra.mxu0 0.0
    %216 = vmatprep.subr.mxu0 0.0
    %217 = vmatpush1.msra.mxu0 0.0
    %218 = vmatprep.subr.mxu0 0.0
    %219 = vmatpush1.msra.mxu0 0.0
    %220 = vmatprep.subr.mxu0 0.0
    %221 = vmatpush1.msra.mxu0 0.0
    %222 = vmatprep.subr.mxu0 0.0
    %223 = vmatpush1.msra.mxu0 0.0
    %224 = vmatprep.subr.mxu0 0.0
    %225 = vmatpush1.msra.mxu0 0.0
    %226 = vmatprep.subr.mxu0 0.0
    %227 = vmatpush1.msra.mxu0 0.0
    %228 = vmatprep.subr.mxu0 0.0
    %229 = vmatpush1.msra.mxu0 0.0
    %230 = vmatprep.subr.mxu0 0.0
    %231 = vmatpush1.msra.mxu0 0.0
    %232 = vmatprep.subr.mxu0 0.0
    %233 = vmatpush1.msra.mxu0 0.0
    %234 = vmatprep.subr.mxu0 0.0
    %235 = vmatpush1.msra.mxu0 0.0
    %236 = vmatprep.subr.mxu0 0.0
    %237 = vmatpush1.msra.mxu0 0.0
    %238 = vmatprep.subr.mxu0 0.0
    %239 = vmatpush1.msra.mxu0 0.0
    %240 = vmatprep.subr.mxu0 0.0
    %241 = vmatpush1.msra.mxu0 0.0
    %242 = vmatprep.mubr.f32.mxu0 0.0
    %243 = vmatmul.mubr.f32.gmra.mrb[0].mxu0 %v105
    %v244 = vpop.f32.mrb[0].mxu0
    %v245 = vadd.f32 %v94, %v244
    %v246 = vpop.f32.mrb[0].mxu0
    %v247 = vadd.f32 %v98, %v246
    %248 = vdwg.mxu0
    %v249 = vxor.u32 %v174, 2147483648
    %v250 = vmul.f32 %v249, 1.442695
    %v251 = vpow.pop %v250
    %v252 = vadd.f32 %v251, 1.0
    %v253 = vrcp.pop %v252
    %v254 = vmul.f32 1.0, %v253
    %v255 = vxor.u32 %v176, 2147483648
    %v256 = vmul.f32 %v255, 1.442695
    %v257 = vpow.pop %v256
    %v258 = vadd.f32 %v257, 1.0
    %v259 = vrcp.pop %v258
    %v260 = vmul.f32 1.0, %v259
    %v261 = vsub.f32 1.0, %v254
    %v262 = vmul.f32 %v261, %v247
    %v263 = vsub.f32 %v245, %v262
    %v264 = vtanh.pop %v263
    %v265 = vsub.f32 1.0, %v260
    %v266 = vmul.f32 %v265, %v264
    %v267 = vmul.f32 %v260, %v42
    %v268 = vadd.f32 %v266, %v267
    %vm269 = vcmask 254976
    %270 = vst.msk [vmem:[#allocation2] sm:$0x3] %vm269, %v268
    %271 = vst.msk [vmem:[%s5] sm:$0x3] %vm269, %v268
    %v272 = vld [vmem:[#allocation3 + $0xc0] sm:$0xff]
    %v273 = vld [vmem:[#allocation3 + $0xe8] sm:$0xff]
    %v274 = vld [vmem:[#allocation3 + $0x110] sm:$0xff]
    %v275 = vld [vmem:[#allocation3 + $0x138] sm:$0xff]
    %v276 = vld [vmem:[%s3 + $0x4] sm:$0x1]
    %v278 = vlaneseq
    %v279 = vshrl.u32 %v278, 7
    %v280 = vsub.s32 0, %v279
    %v281 = vrot.slane %v276, %v280
    %v284 = vsel %vm47, %v268, 0
    %286 = vmatprep.subr.mxu0 0.0
    %287 = vmatpush1.msra.mxu0 %v272
    %288 = vmatprep.subr.mxu0 0.0
    %289 = vmatpush1.msra.mxu0 %v273
    %290 = vmatprep.subr.mxu0 0.0
    %291 = vmatpush1.msra.mxu0 %v274
    %292 = vmatprep.subr.mxu0 0.0
    %293 = vmatpush1.msra.mxu0 %v275
    %294 = vmatprep.subr.mxu0 0.0
    %295 = vmatpush1.msra.mxu0 0.0
    %296 = vmatprep.subr.mxu0 0.0
    %297 = vmatpush1.msra.mxu0 0.0
    %298 = vmatprep.subr.mxu0 0.0
    %299 = vmatpush1.msra.mxu0 0.0
    %300 = vmatprep.subr.mxu0 0.0
    %301 = vmatpush1.msra.mxu0 0.0
    %302 = vmatprep.subr.mxu0 0.0
    %303 = vmatpush1.msra.mxu0 0.0
    %304 = vmatprep.subr.mxu0 0.0
    %305 = vmatpush1.msra.mxu0 0.0
    %306 = vmatprep.subr.mxu0 0.0
    %307 = vmatpush1.msra.mxu0 0.0
    %308 = vmatprep.subr.mxu0 0.0
    %309 = vmatpush1.msra.mxu0 0.0
    %310 = vmatprep.subr.mxu0 0.0
    %311 = vmatpush1.msra.mxu0 0.0
    %312 = vmatprep.subr.mxu0 0.0
    %313 = vmatpush1.msra.mxu0 0.0
    %314 = vmatprep.subr.mxu0 0.0
    %315 = vmatpush1.msra.mxu0 0.0
    %316 = vmatprep.subr.mxu0 0.0
    %317 = vmatpush1.msra.mxu0 0.0
    %318 = vmatprep.subr.mxu0 0.0
    %319 = vmatpush1.msra.mxu0 0.0
    %320 = vmatprep.subr.mxu0 0.0
    %321 = vmatpush1.msra.mxu0 0.0
    %322 = vmatprep.subr.mxu0 0.0
    %323 = vmatpush1.msra.mxu0 0.0
    %324 = vmatprep.subr.mxu0 0.0
    %325 = vmatpush1.msra.mxu0 0.0
    %326 = vmatprep.subr.mxu0 0.0
    %327 = vmatpush1.msra.mxu0 0.0
    %328 = vmatprep.subr.mxu0 0.0
    %329 = vmatpush1.msra.mxu0 0.0
    %330 = vmatprep.subr.mxu0 0.0
    %331 = vmatpush1.msra.mxu0 0.0
    %332 = vmatprep.subr.mxu0 0.0
    %333 = vmatpush1.msra.mxu0 0.0
    %334 = vmatprep.subr.mxu0 0.0
    %335 = vmatpush1.msra.mxu0 0.0
    %336 = vmatprep.subr.mxu0 0.0
    %337 = vmatpush1.msra.mxu0 0.0
    %338 = vmatprep.subr.mxu0 0.0
    %339 = vmatpush1.msra.mxu0 0.0
    %340 = vmatprep.subr.mxu0 0.0
    %341 = vmatpush1.msra.mxu0 0.0
    %342 = vmatprep.subr.mxu0 0.0
    %343 = vmatpush1.msra.mxu0 0.0
    %344 = vmatprep.subr.mxu0 0.0
    %345 = vmatpush1.msra.mxu0 0.0
    %346 = vmatprep.subr.mxu0 0.0
    %347 = vmatpush1.msra.mxu0 0.0
    %348 = vmatprep.subr.mxu0 0.0
    %349 = vmatpush1.msra.mxu0 0.0
    %350 = vmatprep.mubr.f32.mxu0 0.0
    %351 = vmatmul.mubr.f32.gmra.mrb[0].mxu0 %v284
    %v352 = vpop.f32.mrb[0].mxu0
    %v353 = vadd.f32 %v281, %v352
    %v354 = vpop.f32.mrb[0].mxu0
    %355 = vdwg.mxu0
    %356 = vst [vmem:[%s4] sm:$0x3] %v353
    // Predicated region
    $region26: #{gru_decoder_forward.1} parent=1 // pred_check
      _
    $region27: #{gru_decoder_forward.1} parent=1 // pred_check_branch
      %358 = sbr.rel (0) target = $region29
    $region28: #{gru_decoder_forward.1} parent=1 // pred_region
      _
    $region29: #{gru_decoder_forward.1} parent=1 // pred_fallthru
      _
    // Predicated region
    $region30: #{gru_decoder_forward.1} parent=1 // pred_check
      _
    $region31: #{gru_decoder_forward.1} parent=1 // pred_check_branch
      %360 = sbr.rel (0) target = $region33
    $region32: #{gru_decoder_forward.1} parent=1 // pred_region
      _
    $region33: #{gru_decoder_forward.1} parent=1 // pred_fallthru
      _
    // Predicated region
    $region34: #{gru_decoder_forward.1} parent=1 // pred_check
      _
    $region35: #{gru_decoder_forward.1} parent=1 // pred_check_branch
      %362 = sbr.rel (0) target = $region37
    $region36: #{gru_decoder_forward.1} parent=1 // pred_region
      _
    $region37: #{gru_decoder_forward.1} parent=1 // pred_fallthru
      _
    // Predicated region
    $region38: #{gru_decoder_forward.1} parent=1 // pred_check
      _
    $region39: #{gru_decoder_forward.1} parent=1 // pred_check_branch
      %364 = sbr.rel (0) target = $region41
    $region40: #{gru_decoder_forward.1} parent=1 // pred_region
      _
    $region41: #{gru_decoder_forward.1} parent=1 // pred_fallthru
      _
    %365 = vsyncpa [#allocation4], 1

</llo_original>
